<compile_context>
chip_gen: v6e
topology: v6e:2x2x1
jax: 0.10.0
libtpu: 0.0.40
codegen_flags: <defaults>
</compile_context>

<pallas_src>
import functools

import jax
import jax.numpy as jnp
from jax.experimental import pallas as pl
from jax.experimental.pallas import tpu as pltpu


# ----------------------------------------------------------------------------
# Generation-aware VMEM budget and tile selection
# ----------------------------------------------------------------------------
_VMEM_LIMIT_CACHE = None


def _vmem_limit_bytes():
    """~75% of physical VMEM, capped at 100 MiB (96 MiB v5e/v6e, 48 MiB v7x)."""
    global _VMEM_LIMIT_CACHE
    if _VMEM_LIMIT_CACHE is None:
        limit = 48 * 1024 * 1024
        try:
            cap = getattr(pltpu.get_tpu_info(), "vmem_capacity_bytes", None)
            if cap:
                limit = min(int(cap * 0.75), 100 * 1024 * 1024)
        except Exception:
            pass
        _VMEM_LIMIT_CACHE = limit
    return _VMEM_LIMIT_CACHE


def _pick_proj_tile(n_pad):
    # Node tile for the projection: it is the LANE axis of the transposed x_l
    # output block, so it must be a multiple of 128 (n_pad always is).
    for t in (512, 256, 128):
        if n_pad % t == 0:
            return t
    return n_pad


def _pick_target_tile(n_pad, *, heads, head_dim, out_dim, alpha_bytes, with_alpha,
                      vmem_limit):
    """Largest target-row tile whose per-step footprint fits the VMEM budget."""
    hc = heads * head_dim
    budget = int(vmem_limit * 0.65)
    fixed = hc * n_pad * 4                       # xl_t, single-buffered

    def footprint(ti):
        f = fixed
        f += 2 * ti * n_pad * 2                  # mask (bf16), double-buffered
        f += 2 * ti * hc * 4                     # x_r tile
        f += 2 * ti * out_dim * 4                # output tile
        if with_alpha:
            f += 2 * heads * ti * n_pad * alpha_bytes
        f += 5 * ti * n_pad * 4                  # in-kernel f32 temporaries
        return f

    for t in (512, 256, 128, 64, 32, 16, 8):
        if n_pad % t == 0 and footprint(t) <= budget:
            return t
    return 8


def _single_buffered_spec(block_shape, index_map):
    # Grid-invariant block: no need to pay 2x VMEM for double-buffering.
    try:
        return pl.BlockSpec(block_shape, index_map, pipeline_mode=pl.Buffered(1))
    except Exception:  # older jax without pipeline_mode support
        return pl.BlockSpec(block_shape, index_map)


# ----------------------------------------------------------------------------
# Kernel 1: fused projections for all heads (x_l transposed, x_r standard)
# ----------------------------------------------------------------------------
def gatv2_project_kernel(x_ref, wlt_ref, wrt_ref, blt_ref, br_ref,
                         xl_t_ref, xr_ref, *, input_act_slope, mxu_dtype):
    x = x_ref[...]                                        # [TN, Fin]
    if input_act_slope is not None:
        # previous layer's LeakyReLU(0.01) fused into this layer's input
        x = jnp.maximum(x, input_act_slope * x)
    xc = x.astype(mxu_dtype)
    wlt = wlt_ref[...].astype(mxu_dtype)                  # [H*C, Fin]
    wrt = wrt_ref[...].astype(mxu_dtype)                  # [H*C, Fin]
    # x_l^T = (x @ W_l)^T  -> [H*C, TN]   (A @ B^T on the MXU, f32 accumulate)
    xl_t = jax.lax.dot_general(wlt, xc,
                               dimension_numbers=(((1,), (1,)), ((), ())),
                               preferred_element_type=jnp.float32)
    # x_r   =  x @ W_r     -> [TN, H*C]
    xr = jax.lax.dot_general(xc, wrt,
                             dimension_numbers=(((1,), (1,)), ((), ())),
                             preferred_element_type=jnp.float32)
    xl_t_ref[...] = xl_t + blt_ref[...]                   # b_l: [H*C, 1]
    xr_ref[...] = xr + br_ref[...]                        # b_r: [1, H*C]


# ----------------------------------------------------------------------------
# Kernel 2: attention + softmax + aggregation, tiled over target rows
# ----------------------------------------------------------------------------
def gatv2_attn_kernel(att_ref, att_t_ref, xl_t_ref, xr_ref, mask_ref, bias_ref,
                      out_ref, *maybe_alpha_ref, num_heads, head_dim, concat,
                      mxu_dtype):
    H, C = num_heads, head_dim
    alpha_ref = maybe_alpha_ref[0] if maybe_alpha_ref else None

    att = att_ref[...]                          # [H, C]  f32
    att_t = att_t_ref[...]                      # [C, H]  f32
    att_abs = att * 0.4                         # folded coefficient of the |v| term
    xl_t = xl_t_ref[...]                        # [H*C, N]  sources in lanes
    xr = xr_ref[...]                            # [TI, H*C] targets (this tile)
    mask_f32 = mask_ref[...].astype(jnp.float32)  # [TI, N] additive mask (bf16 in HBM)
    bias = bias_ref[...]                        # [1, out_dim]

    acc = None
    for h in range(H):
        k0 = h * C
        xl_h = xl_t[k0:k0 + C, :]               # [C, N]
        xr_h = xr[:, k0:k0 + C]                 # [TI, C]
        # GATv2 score: sum_c att[h,c] * leaky_relu(xr[i,c] + xl[j,c], 0.2)
        # leaky_relu(v, 0.2) == 0.6*v + 0.4*|v|  ->  the linear part is a rank-1
        # broadcast add hoisted out of the channel loop.
        lin_r = jnp.sum(xr_h * att[h:h + 1, :], axis=1, keepdims=True)     # [TI, 1]
        lin_l = jnp.sum(xl_h * att_t[:, h:h + 1], axis=0, keepdims=True)   # [1, N]
        scores = (mask_f32 + 0.6 * lin_r) + 0.6 * lin_l                    # [TI, N]
        # only the |v| term stays per-channel: add + abs + scaled-add
        for c in range(C):
            k = k0 + c
            v = xr[:, k:k + 1] + xl_t[k:k + 1, :]                          # [TI, N]
            scores = scores + att_abs[h:h + 1, c:c + 1] * jnp.abs(v)
        # ---- masked softmax over sources (lane axis), f32 VPU math ----
        scores = scores - jnp.max(scores, axis=1, keepdims=True)
        e = jnp.exp(scores)
        denom = jnp.sum(e, axis=1, keepdims=True)
        inv = pl.reciprocal(denom, approx=True)
        inv = inv * (2.0 - denom * inv)         # one Newton step -> ~exact
        alpha = e * inv                         # [TI, N]
        if alpha_ref is not None:
            alpha_ref[h] = alpha.astype(alpha_ref.dtype)
        # ---- aggregate on the MXU: out[i] = sum_j alpha[i, j] * x_l[j] ----
        out_h = jax.lax.dot_general(
            alpha.astype(mxu_dtype), xl_h.astype(mxu_dtype),
            dimension_numbers=(((1,), (1,)), ((), ())),
            preferred_element_type=jnp.float32)                            # [TI, C]
        if concat:
            out_ref[:, k0:k0 + C] = out_h + bias[:, k0:k0 + C]
        else:
            acc = out_h if acc is None else acc + out_h
    if not concat:
        out_ref[...] = acc * (1.0 / H) + bias


# ----------------------------------------------------------------------------
# One GATv2Conv layer = projection pallas_call + attention pallas_call
# ----------------------------------------------------------------------------
def gatv2_layer(x, mask_add, params, *, concat, input_act_slope=None,
                mxu_dtype=jnp.bfloat16, alpha_dtype=jnp.bfloat16,
                return_alpha=True):
    N, fin = x.shape                        # N is already padded to a multiple of 128
    H, C = params["heads"], params["out_channels"]
    HC = H * C
    vmem_limit = _vmem_limit_bytes()

    # ---- projections (all heads fused, computed once per layer) ----
    tn = _pick_proj_tile(N)
    xl_t, xr = pl.pallas_call(
        functools.partial(gatv2_project_kernel,
                          input_act_slope=input_act_slope, mxu_dtype=mxu_dtype),
        out_shape=(jax.ShapeDtypeStruct((HC, N), jnp.float32),
                   jax.ShapeDtypeStruct((N, HC), jnp.float32)),
        grid=(pl.cdiv(N, tn),),
        in_specs=[
            pl.BlockSpec((tn, fin), lambda i: (i, 0)),    # x tile
            pl.BlockSpec((HC, fin), lambda i: (0, 0)),    # W_l^T (all heads)
            pl.BlockSpec((HC, fin), lambda i: (0, 0)),    # W_r^T (all heads)
            pl.BlockSpec((HC, 1), lambda i: (0, 0)),      # b_l
            pl.BlockSpec((1, HC), lambda i: (0, 0)),      # b_r
        ],
        out_specs=(
            pl.BlockSpec((HC, tn), lambda i: (0, i)),     # x_l^T
            pl.BlockSpec((tn, HC), lambda i: (i, 0)),     # x_r
        ),
        compiler_params=pltpu.CompilerParams(
            dimension_semantics=("parallel",),
            vmem_limit_bytes=vmem_limit),
    )(x, params["Wlt"], params["Wrt"], params["blt"], params["br"])

    # ---- attention + aggregation, tiled over target rows ----
    out_dim = HC if concat else C
    ti = _pick_target_tile(N, heads=H, head_dim=C, out_dim=out_dim,
                           alpha_bytes=jnp.dtype(alpha_dtype).itemsize,
                           with_alpha=return_alpha, vmem_limit=vmem_limit)

    if return_alpha:
        out_shape = (jax.ShapeDtypeStruct((N, out_dim), jnp.float32),
                     jax.ShapeDtypeStruct((H, N, N), alpha_dtype))
        out_specs = (pl.BlockSpec((ti, out_dim), lambda i: (i, 0)),
                     pl.BlockSpec((H, ti, N), lambda i: (0, i, 0)))
    else:
        out_shape = jax.ShapeDtypeStruct((N, out_dim), jnp.float32)
        out_specs = pl.BlockSpec((ti, out_dim), lambda i: (i, 0))

    results = pl.pallas_call(
        functools.partial(gatv2_attn_kernel, num_heads=H, head_dim=C,
                          concat=concat, mxu_dtype=mxu_dtype),
        out_shape=out_shape,
        grid=(pl.cdiv(N, ti),),
        in_specs=[
            pl.BlockSpec((H, C), lambda i: (0, 0)),        # att
            pl.BlockSpec((C, H), lambda i: (0, 0)),        # att^T (column broadcast)
            _single_buffered_spec((HC, N), lambda i: (0, 0)),  # x_l^T (grid-invariant)
            pl.BlockSpec((ti, HC), lambda i: (i, 0)),      # x_r tile (targets)
            pl.BlockSpec((ti, N), lambda i: (i, 0)),       # additive mask tile (bf16)
            pl.BlockSpec((1, out_dim), lambda i: (0, 0)),  # output bias
        ],
        out_specs=out_specs,
        compiler_params=pltpu.CompilerParams(
            dimension_semantics=("parallel",),
            vmem_limit_bytes=vmem_limit),
    )(params["att"], params["att_t"], xl_t, xr, mask_add, params["bias"])

    if return_alpha:
        out, alpha = results
    else:
        out, alpha = results, None
    return out, alpha


# ----------------------------------------------------------------------------
# Parameter init (deterministic, glorot-uniform-style scale), packed per layer
# ----------------------------------------------------------------------------
def init_gatv2_params(key, fin, cout, heads, concat):
    ks = jax.random.split(key, 6)
    scale = (6.0 / (fin + heads * cout)) ** 0.5
    hc = heads * cout
    Wl = jax.random.uniform(ks[0], (heads, fin, cout), jnp.float32, -scale, scale)
    Wr = jax.random.uniform(ks[1], (heads, fin, cout), jnp.float32, -scale, scale)
    bl = 0.01 * jax.random.normal(ks[2], (heads, cout), jnp.float32)
    br = 0.01 * jax.random.normal(ks[3], (heads, cout), jnp.float32)
    att = jax.random.uniform(ks[4], (heads, cout), jnp.float32, -scale, scale)
    out_dim = hc if concat else cout
    bias = 0.01 * jax.random.normal(ks[5], (1, out_dim), jnp.float32)
    # Head-fused layouts consumed by the kernels:
    #   Wlt[h*C + c, f] = Wl[h, f, c]   (so x_l^T rows are (head, channel) pairs)
    Wlt = jnp.transpose(Wl, (0, 2, 1)).reshape(hc, fin)
    Wrt = jnp.transpose(Wr, (0, 2, 1)).reshape(hc, fin)
    blt = bl.reshape(hc, 1)
    brr = br.reshape(1, hc)
    return dict(Wlt=Wlt, Wrt=Wrt, blt=blt, br=brr, att=att, att_t=att.T,
                bias=bias, heads=heads, out_channels=cout)


# ----------------------------------------------------------------------------
# GAT_Encoder equivalent
# ----------------------------------------------------------------------------
class GATEncoderPallas:
    LATENT_DIM = 10

    def __init__(self, in_channels, num_heads, hidden_dims, concat, key, *,
                 mxu_dtype=jnp.bfloat16, alpha_dtype=jnp.bfloat16):
        # bf16 MXU operands / bf16 alpha storage by default (f32 accumulation);
        # pass jnp.float32 for bit-fidelity at toy sizes.
        k1, k2, k3 = jax.random.split(key, 3)
        self.concat = concat
        self.mxu_dtype = mxu_dtype
        self.alpha_dtype = alpha_dtype
        self.p1 = init_gatv2_params(k1, in_channels, hidden_dims[0],
                                    num_heads["first"], concat["first"])
        in_dim_hidden = (hidden_dims[0] * num_heads["first"]
                         if concat["first"] else hidden_dims[0])
        self.p2 = init_gatv2_params(k2, in_dim_hidden, hidden_dims[1],
                                    num_heads["second"], concat["second"])
        in_dim_final = (hidden_dims[-1] * num_heads["second"]
                        if concat["second"] else hidden_dims[-1])
        self.pz = init_gatv2_params(k3, in_dim_final, self.LATENT_DIM,
                                    num_heads["mean"], concat=False)

    def __call__(self, x, edge_index, return_attention_weights=True):
        N = x.shape[0]
        # remove_self_loops + add_self_loops (PyG GATv2Conv default behaviour)
        src, dst = edge_index
        keep = src != dst
        loops = jnp.arange(N, dtype=edge_index.dtype)
        edge_index_sl = jnp.concatenate(
            [jnp.stack([src[keep], dst[keep]]), jnp.stack([loops, loops])], axis=1)

        # Pad the node axis to a multiple of 128: lane-dense stores and no tiny tiles.
        n_pad = ((N + 127) // 128) * 128
        x_p = jnp.pad(x, ((0, n_pad - N), (0, 0)))

        # Additive softmax mask (0 on edges incl. self-loops, -1e30 else), stored bf16.
        # TODO(synk): duplicate edges are deduplicated here; PyG's edge softmax would
        # count multi-edges separately on multigraphs.
        mask = jnp.full((n_pad, n_pad), -1e30, jnp.float32)
        mask = mask.at[edge_index_sl[1], edge_index_sl[0]].set(0.0)
        if n_pad > N:
            pad_ids = jnp.arange(N, n_pad)
            mask = mask.at[pad_ids, pad_ids].set(0.0)   # benign softmax on pad rows
        mask = mask.astype(jnp.bfloat16)

        kw = dict(mxu_dtype=self.mxu_dtype, alpha_dtype=self.alpha_dtype,
                  return_alpha=return_attention_weights)
        h1, a1 = gatv2_layer(x_p, mask, self.p1, concat=self.concat["first"],
                             input_act_slope=None, **kw)
        h2, a2 = gatv2_layer(h1, mask, self.p2, concat=self.concat["second"],
                             input_act_slope=0.01, **kw)
        # TODO(synk): F.dropout(p=0.4) and in-layer attention dropout are identity in
        # eval mode (training=False); not implemented (no RNG in inference path).
        z, az = gatv2_layer(h2, mask, self.pz, concat=False,
                            input_act_slope=0.01, **kw)
        z = z[:N]

        if not return_attention_weights:
            return z, None

        def edge_alpha(alpha_dense):  # [H, Npad, Npad] -> [E, H] (PyG ordering)
            g = alpha_dense[:, edge_index_sl[1], edge_index_sl[0]].T
            return g.astype(jnp.float32)

        attn_w_1 = (edge_index_sl, edge_alpha(a1))
        attn_w_2 = (edge_index_sl, edge_alpha(a2))
        attn_w_z = (edge_index_sl, edge_alpha(az))
        return z, (attn_w_1, attn_w_2, attn_w_z)


if __name__ == "__main__":
    key = jax.random.PRNGKey(0)
    k_param, k_x = jax.random.split(key)

    # Small config consistent with the module's __init__ signature
    N = 16
    in_channels = 8
    num_heads = {"first": 2, "second": 2, "mean": 2}
    hidden_dims = [16, 8]
    concat = {"first": True, "second": True}

    encoder = GATEncoderPallas(in_channels, num_heads, hidden_dims, concat, k_param)

    # Deterministic inputs: node features + bidirectional ring graph
    x = jax.random.normal(k_x, (N, in_channels), jnp.float32)
    src = jnp.arange(N, dtype=jnp.int32)
    dst = (src + 1) % N
    edge_index = jnp.concatenate(
        [jnp.stack([src, dst]), jnp.stack([dst, src])], axis=1)  # [2, 2N]

    z, (aw1, aw2, awz) = encoder(x, edge_index)
    jax.block_until_ready(z)
    jax.block_until_ready(aw1[1])
    jax.block_until_ready(aw2[1])
    jax.block_until_ready(awz[1])

    assert z.shape == (N, GATEncoderPallas.LATENT_DIM)
    assert aw1[1].shape == (edge_index.shape[1] + N, num_heads["first"])
    assert aw2[1].shape == (edge_index.shape[1] + N, num_heads["second"])
    assert awz[1].shape == (edge_index.shape[1] + N, num_heads["mean"])
    assert bool(jnp.all(jnp.isfinite(z)))
    assert bool(jnp.all(jnp.isfinite(aw1[1])))
    print("KERNEL_OK")
</pallas_src>

<mosaic_0001>
module attributes {stable_mosaic.version = 11 : i64} {
  func.func @gatv2_project_kernel(%arg0: i32, %arg1: memref<128x8xf32, #tpu.memory_space<vmem>>, %arg2: memref<32x8xf32, #tpu.memory_space<vmem>>, %arg3: memref<32x8xf32, #tpu.memory_space<vmem>>, %arg4: memref<32x1xf32, #tpu.memory_space<vmem>>, %arg5: memref<1x32xf32, #tpu.memory_space<vmem>>, %arg6: memref<32x128xf32, #tpu.memory_space<vmem>>, %arg7: memref<128x32xf32, #tpu.memory_space<vmem>>) attributes {dimension_semantics = [#tpu.dimension_semantics<parallel>], iteration_bounds = array<i64: 1>, scalar_prefetch = 0 : i64, scratch_operands = 0 : i64, tpu.core_type = #tpu.core_type<tc>, window_params = [{transform_indices = @transform_0, window_bounds = array<i64: 128, 8>}, {pipeline_mode = #tpu.pipeline_mode<synchronous>, transform_indices = @transform_1, window_bounds = array<i64: 32, 8>}, {pipeline_mode = #tpu.pipeline_mode<synchronous>, transform_indices = @transform_2, window_bounds = array<i64: 32, 8>}, {pipeline_mode = #tpu.pipeline_mode<synchronous>, transform_indices = @transform_3, window_bounds = array<i64: 32, 1>}, {pipeline_mode = #tpu.pipeline_mode<synchronous>, transform_indices = @transform_4, window_bounds = array<i64: 1, 32>}, {transform_indices = @transform_5, window_bounds = array<i64: 32, 128>}, {transform_indices = @transform_6, window_bounds = array<i64: 128, 32>}]} {
    %c0 = arith.constant 0 : index
    %c0_0 = arith.constant 0 : index
    %0 = vector.load %arg1[%c0, %c0_0] : memref<128x8xf32, #tpu.memory_space<vmem>>, vector<128x8xf32>
    %1 = arith.truncf %0 : vector<128x8xf32> to vector<128x8xbf16>
    %c0_1 = arith.constant 0 : index
    %c0_2 = arith.constant 0 : index
    %2 = vector.load %arg2[%c0_1, %c0_2] : memref<32x8xf32, #tpu.memory_space<vmem>>, vector<32x8xf32>
    %3 = arith.truncf %2 : vector<32x8xf32> to vector<32x8xbf16>
    %c0_3 = arith.constant 0 : index
    %c0_4 = arith.constant 0 : index
    %4 = vector.load %arg3[%c0_3, %c0_4] : memref<32x8xf32, #tpu.memory_space<vmem>>, vector<32x8xf32>
    %5 = arith.truncf %4 : vector<32x8xf32> to vector<32x8xbf16>
    %cst = arith.constant dense<0.000000e+00> : vector<32x128xf32>
    %6 = tpu.matmul %3, %1, %cst {dimension_numbers = #tpu.dot_dimension_numbers<[1], [1], [0], [0], [0, 0, 1, 0], [], []>} : vector<32x8xbf16>, vector<128x8xbf16>, vector<32x128xf32> -> vector<32x128xf32>
    %cst_5 = arith.constant dense<0.000000e+00> : vector<128x32xf32>
    %7 = tpu.matmul %1, %5, %cst_5 {dimension_numbers = #tpu.dot_dimension_numbers<[1], [1], [0], [0], [0, 0, 1, 0], [], []>} : vector<128x8xbf16>, vector<32x8xbf16>, vector<128x32xf32> -> vector<128x32xf32>
    %c0_6 = arith.constant 0 : index
    %c0_7 = arith.constant 0 : index
    %8 = vector.load %arg4[%c0_6, %c0_7] : memref<32x1xf32, #tpu.memory_space<vmem>>, vector<32x1xf32>
    %9 = vector.broadcast %8 : vector<32x1xf32> to vector<32x128xf32>
    %10 = arith.addf %6, %9 : vector<32x128xf32>
    %c0_8 = arith.constant 0 : index
    %c0_9 = arith.constant 0 : index
    %11 = vector.load %arg6[%c0_8, %c0_9] : memref<32x128xf32, #tpu.memory_space<vmem>>, vector<32x128xf32>
    tpu.vector_store %arg6[%c0_8, %c0_9], %10 {strides = array<i32>} : memref<32x128xf32, #tpu.memory_space<vmem>>, vector<32x128xf32>,
    %c0_10 = arith.constant 0 : index
    %c0_11 = arith.constant 0 : index
    %12 = vector.load %arg5[%c0_10, %c0_11] : memref<1x32xf32, #tpu.memory_space<vmem>>, vector<1x32xf32>
    %13 = vector.broadcast %12 : vector<1x32xf32> to vector<128x32xf32>
    %14 = arith.addf %7, %13 : vector<128x32xf32>
    %c0_12 = arith.constant 0 : index
    %c0_13 = arith.constant 0 : index
    %15 = vector.load %arg7[%c0_12, %c0_13] : memref<128x32xf32, #tpu.memory_space<vmem>>, vector<128x32xf32>
    tpu.vector_store %arg7[%c0_12, %c0_13], %14 {strides = array<i32>} : memref<128x32xf32, #tpu.memory_space<vmem>>, vector<128x32xf32>,
    return
  }
  func.func @transform_0(%arg0: i32) -> (i32, i32) {
    %c0_i32 = arith.constant 0 : i32
    %c0_i32_0 = arith.constant 0 : i32
    return %arg0, %c0_i32 : i32, i32
  }
  func.func @transform_1(%arg0: i32) -> (i32, i32) {
    %c0_i32 = arith.constant 0 : i32
    %c0_i32_0 = arith.constant 0 : i32
    %c0_i32_1 = arith.constant 0 : i32
    return %c0_i32, %c0_i32_0 : i32, i32
  }
  func.func @transform_2(%arg0: i32) -> (i32, i32) {
    %c0_i32 = arith.constant 0 : i32
    %c0_i32_0 = arith.constant 0 : i32
    %c0_i32_1 = arith.constant 0 : i32
    return %c0_i32, %c0_i32_0 : i32, i32
  }
  func.func @transform_3(%arg0: i32) -> (i32, i32) {
    %c0_i32 = arith.constant 0 : i32
    %c0_i32_0 = arith.constant 0 : i32
    %c0_i32_1 = arith.constant 0 : i32
    return %c0_i32, %c0_i32_0 : i32, i32
  }
  func.func @transform_4(%arg0: i32) -> (i32, i32) {
    %c0_i32 = arith.constant 0 : i32
    %c0_i32_0 = arith.constant 0 : i32
    %c0_i32_1 = arith.constant 0 : i32
    return %c0_i32, %c0_i32_0 : i32, i32
  }
  func.func @transform_5(%arg0: i32) -> (i32, i32) {
    %c0_i32 = arith.constant 0 : i32
    %c0_i32_0 = arith.constant 0 : i32
    return %c0_i32, %arg0 : i32, i32
  }
  func.func @transform_6(%arg0: i32) -> (i32, i32) {
    %c0_i32 = arith.constant 0 : i32
    %c0_i32_0 = arith.constant 0 : i32
    return %arg0, %c0_i32 : i32, i32
  }
}

</mosaic_0001>

<llo_original>
// kernel: tpu_custom_call.1
$region0: #{tpu_custom_call.1}
  #allocation0 [shape = 'u32[]', space=smem, size = 0x4, offset = 0x4, fixed_abs, tag = 'smem constant byte address 0x4 - core index']
  #allocation1 [shape = 'u32[144,128]{1,0:T(1,128)}', space=vmem, size = 0x12000, scoped, tag = 'internal scratch']
  %s0 = inlined_call_operand.vmem [shape: f32[128,8], index: 0, kind: input, shape index: {}]
  %s1 = inlined_call_operand.vmem [shape: f32[32,8], index: 1, kind: input, shape index: {}]
  %s2 = inlined_call_operand.vmem [shape: f32[32,8], index: 2, kind: input, shape index: {}]
  %s3 = inlined_call_operand.vmem [shape: f32[32,1], index: 3, kind: input, shape index: {}]
  %s4 = inlined_call_operand.vmem [shape: f32[1,32], index: 4, kind: input, shape index: {}]
  %s5 = inlined_call_operand.hbm [shape: f32[32,128], index: 5, kind: output, shape index: {0}]
  %s6 = inlined_call_operand.vmem [shape: f32[128,32], index: 6, kind: output, shape index: {1}]
  %7 = xla_tuple %s5, %s6
  %s8 = sld [smem:[#allocation0]]
  $region38: #{tpu_custom_call.1} parent=0
    _
  %s10 = ssub.s32 1, %s8
  %s11 = scalar_select 0, %s10, %s8
  $region1: #{tpu_custom_call.1} parent=0
    #allocation2 [shape = 'u8[16384]{0}', space=vmem, size = 0x4000, scoped, tag = 'output window, operand 0, single buffered']
    #allocation3 [shape = 's32[1]{0}', space=sflag, size = 0x4, scoped, tag = 'scoped memory for tpu_custom_call.1']
    %12 = vsyncpa [#allocation3], 0
    // Predicated region
    $region2: #{tpu_custom_call.1} parent=1 // pred_check
      _
    $region3: #{tpu_custom_call.1} parent=1 // pred_check_branch
      %14 = sbr.rel (0) target = $region5
    $region4: #{tpu_custom_call.1} parent=1 // pred_region
      _
    $region5: #{tpu_custom_call.1} parent=1 // pred_fallthru
      _
    // Predicated region
    $region6: #{tpu_custom_call.1} parent=1 // pred_check
      _
    $region7: #{tpu_custom_call.1} parent=1 // pred_check_branch
      %16 = sbr.rel (0) target = $region9
    $region8: #{tpu_custom_call.1} parent=1 // pred_region
      _
    $region9: #{tpu_custom_call.1} parent=1 // pred_fallthru
      _
    // Predicated region
    $region10: #{tpu_custom_call.1} parent=1 // pred_check
      _
    $region11: #{tpu_custom_call.1} parent=1 // pred_check_branch
      %18 = sbr.rel (0) target = $region13
    $region12: #{tpu_custom_call.1} parent=1 // pred_region
      _
    $region13: #{tpu_custom_call.1} parent=1 // pred_fallthru
      _
    // Predicated region
    $region14: #{tpu_custom_call.1} parent=1 // pred_check
      _
    $region15: #{tpu_custom_call.1} parent=1 // pred_check_branch
      %20 = sbr.rel (0) target = $region17
    $region16: #{tpu_custom_call.1} parent=1 // pred_region
      _
    $region17: #{tpu_custom_call.1} parent=1 // pred_fallthru
      _
    // Predicated region
    $region18: #{tpu_custom_call.1} parent=1 // pred_check
      _
    $region19: #{tpu_custom_call.1} parent=1 // pred_check_branch
      %22 = sbr.rel (0) target = $region21
    $region20: #{tpu_custom_call.1} parent=1 // pred_region
      _
    $region21: #{tpu_custom_call.1} parent=1 // pred_fallthru
      _
    %v24 = vld [vmem:[%s0] sm:$0xff]
    %v25 = vld [vmem:[%s0 + $0x8] sm:$0xff]
    %v26 = vld [vmem:[%s0 + $0x10] sm:$0xff]
    %v27 = vld [vmem:[%s0 + $0x18] sm:$0xff]
    %v28 = vld [vmem:[%s0 + $0x20] sm:$0xff]
    %v29 = vld [vmem:[%s0 + $0x28] sm:$0xff]
    %v30 = vld [vmem:[%s0 + $0x30] sm:$0xff]
    %v31 = vld [vmem:[%s0 + $0x38] sm:$0xff]
    %v32 = vld [vmem:[%s0 + $0x40] sm:$0xff]
    %v33 = vld [vmem:[%s0 + $0x48] sm:$0xff]
    %v34 = vld [vmem:[%s0 + $0x50] sm:$0xff]
    %v35 = vld [vmem:[%s0 + $0x58] sm:$0xff]
    %v36 = vld [vmem:[%s0 + $0x60] sm:$0xff]
    %v37 = vld [vmem:[%s0 + $0x68] sm:$0xff]
    %v38 = vld [vmem:[%s0 + $0x70] sm:$0xff]
    %v39 = vld [vmem:[%s0 + $0x78] sm:$0xff]
    %v40 = vpack.c.bf16 %v25, %v24
    %v41 = vpack.c.bf16 %v27, %v26
    %v42 = vpack.c.bf16 %v29, %v28
    %v43 = vpack.c.bf16 %v31, %v30
    %v44 = vpack.c.bf16 %v33, %v32
    %v45 = vpack.c.bf16 %v35, %v34
    %v46 = vpack.c.bf16 %v37, %v36
    %v47 = vpack.c.bf16 %v39, %v38
    %v48 = vld [vmem:[%s1] sm:$0xff]
    %v49 = vld [vmem:[%s1 + $0x8] sm:$0xff]
    %v50 = vld [vmem:[%s1 + $0x10] sm:$0xff]
    %v51 = vld [vmem:[%s1 + $0x18] sm:$0xff]
    %v52 = vpack.c.bf16 %v49, %v48
    %v53 = vpack.c.bf16 %v51, %v50
    %v54 = vld [vmem:[%s2] sm:$0xff]
    %v55 = vld [vmem:[%s2 + $0x8] sm:$0xff]
    %v56 = vld [vmem:[%s2 + $0x10] sm:$0xff]
    %v57 = vld [vmem:[%s2 + $0x18] sm:$0xff]
    %v58 = vpack.c.bf16 %v55, %v54
    %v59 = vpack.c.bf16 %v57, %v56
    %v60 = vld [vmem:[%s3] sm:$0xff]
    %v61 = vld [vmem:[%s3 + $0x8] sm:$0xff]
    %v62 = vld [vmem:[%s3 + $0x10] sm:$0xff]
    %v63 = vld [vmem:[%s3 + $0x18] sm:$0xff]
    %65 = vset.pattern.permute.xlu0 0
    %66 = vperm.xlu0 %65, %v60
    %v67 = vpop.permute.xlu0 %66
    %70 = vset.pattern.permute.xlu0 0
    %71 = vperm.xlu0 %70, %v61
    %v72 = vpop.permute.xlu0 %71
    %75 = vset.pattern.permute.xlu0 0
    %76 = vperm.xlu0 %75, %v62
    %v77 = vpop.permute.xlu0 %76
    %80 = vset.pattern.permute.xlu0 0
    %81 = vperm.xlu0 %80, %v63
    %v82 = vpop.permute.xlu0 %81
    %vm84 = vcmask 64512
    %v86 = vsel %vm84, %v52, 0
    %v89 = vsel %vm84, %v53, 0
    %v92 = vsel %vm84, %v40, 0
    %v95 = vsel %vm84, %v41, 0
    %v98 = vsel %vm84, %v42, 0
    %v101 = vsel %vm84, %v43, 0
    %v104 = vsel %vm84, %v44, 0
    %v107 = vsel %vm84, %v45, 0
    %v110 = vsel %vm84, %v46, 0
    %v113 = vsel %vm84, %v47, 0
    %115 = vmatprep.subr.bf16.mxu0 0
    %116 = vmatpush1.bf16.xpose.msra.mxu0 %v113
    %117 = vmatprep.subr.bf16.mxu0 0
    %118 = vmatpush1.bf16.xpose.msra.mxu0 %v110
    %119 = vmatprep.subr.bf16.mxu0 0
    %120 = vmatpush1.bf16.xpose.msra.mxu0 %v107
    %121 = vmatprep.subr.bf16.mxu0 0
    %122 = vmatpush1.bf16.xpose.msra.mxu0 %v104
    %123 = vmatprep.subr.bf16.mxu0 0
    %124 = vmatpush1.bf16.xpose.msra.mxu0 %v101
    %125 = vmatprep.subr.bf16.mxu0 0
    %126 = vmatpush1.bf16.xpose.msra.mxu0 %v98
    %127 = vmatprep.subr.bf16.mxu0 0
    %128 = vmatpush1.bf16.xpose.msra.mxu0 %v95
    %129 = vmatprep.subr.bf16.mxu0 0
    %130 = vmatpush1.bf16.xpose.msra.mxu0 %v92
    %131 = vmatprep.subr.bf16.mxu0 0
    %132 = vmatpush2.bf16.xpose.msra.mxu0 0
    %133 = vmatprep.subr.bf16.mxu0 0
    %134 = vmatpush2.bf16.xpose.msra.mxu0 0
    %135 = vmatprep.subr.bf16.mxu0 0
    %136 = vmatpush2.bf16.xpose.msra.mxu0 0
    %137 = vmatprep.subr.bf16.mxu0 0
    %138 = vmatpush2.bf16.xpose.msra.mxu0 0
    %139 = vmatprep.subr.bf16.mxu0 0
    %140 = vmatpush2.bf16.xpose.msra.mxu0 0
    %141 = vmatprep.subr.bf16.mxu0 0
    %142 = vmatpush2.bf16.xpose.msra.mxu0 0
    %143 = vmatprep.subr.bf16.mxu0 0
    %144 = vmatpush2.bf16.xpose.msra.mxu0 0
    %145 = vmatprep.subr.bf16.mxu0 0
    %146 = vmatpush2.bf16.xpose.msra.mxu0 0
    %147 = vmatprep.mubr.bf16.mxu0 0
    %148 = vmatmul.mubr.bf16.gmra.mxu0 %v86
    %v149 = vpop.f32.mrf.mxu0
    %v150 = vadd.f32 %v67, %v149
    %v151 = vpop.f32.mrf.mxu0
    %v152 = vpop.f32.mrf.mxu0
    %v153 = vadd.f32 %v72, %v152
    %v154 = vpop.f32.mrf.mxu0
    %155 = vmatprep.mubr.bf16.mxu0 0
    %156 = vmatmul.mubr.bf16.gmra.mxu0 %v89
    %v157 = vpop.f32.mrf.mxu0
    %v158 = vadd.f32 %v77, %v157
    %v159 = vpop.f32.mrf.mxu0
    %v160 = vpop.f32.mrf.mxu0
    %v161 = vadd.f32 %v82, %v160
    %v162 = vpop.f32.mrf.mxu0
    %163 = vdwg.mxu0
    %164 = vst [vmem:[#allocation2] sm:$0xff] %v150
    %165 = vst [vmem:[#allocation2 + $0x8] sm:$0xff] %v153
    %166 = vst [vmem:[#allocation2 + $0x10] sm:$0xff] %v158
    %167 = vst [vmem:[#allocation2 + $0x18] sm:$0xff] %v161
    %v168 = vld [vmem:[%s4] sm:$0x1]
    %v170 = vlaneseq
    %v171 = vshrl.u32 %v170, 7
    %v172 = vsub.s32 0, %v171
    %v173 = vrot.slane %v168, %v172
    %v176 = vsel %vm84, %v58, 0
    %v179 = vsel %vm84, %v59, 0
    %181 = vmatprep.subr.bf16.mxu0 0
    %182 = vmatpush1.bf16.xpose.msra.mxu0 0
    %183 = vmatprep.subr.bf16.mxu0 0
    %184 = vmatpush1.bf16.xpose.msra.mxu0 0
    %185 = vmatprep.subr.bf16.mxu0 0
    %186 = vmatpush1.bf16.xpose.msra.mxu0 0
    %187 = vmatprep.subr.bf16.mxu0 0
    %188 = vmatpush1.bf16.xpose.msra.mxu0 0
    %189 = vmatprep.subr.bf16.mxu0 0
    %190 = vmatpush1.bf16.xpose.msra.mxu0 0
    %191 = vmatprep.subr.bf16.mxu0 0
    %192 = vmatpush1.bf16.xpose.msra.mxu0 0
    %193 = vmatprep.subr.bf16.mxu0 0
    %194 = vmatpush1.bf16.xpose.msra.mxu0 %v179
    %195 = vmatprep.subr.bf16.mxu0 0
    %196 = vmatpush1.bf16.xpose.msra.mxu0 %v176
    %197 = vmatprep.subr.bf16.mxu0 0
    %198 = vmatpush2.bf16.xpose.msra.mxu0 0
    %199 = vmatprep.subr.bf16.mxu0 0
    %200 = vmatpush2.bf16.xpose.msra.mxu0 0
    %201 = vmatprep.subr.bf16.mxu0 0
    %202 = vmatpush2.bf16.xpose.msra.mxu0 0
    %203 = vmatprep.subr.bf16.mxu0 0
    %204 = vmatpush2.bf16.xpose.msra.mxu0 0
    %205 = vmatprep.subr.bf16.mxu0 0
    %206 = vmatpush2.bf16.xpose.msra.mxu0 0
    %207 = vmatprep.subr.bf16.mxu0 0
    %208 = vmatpush2.bf16.xpose.msra.mxu0 0
    %209 = vmatprep.subr.bf16.mxu0 0
    %210 = vmatpush2.bf16.xpose.msra.mxu0 0
    %211 = vmatprep.subr.bf16.mxu0 0
    %212 = vmatpush2.bf16.xpose.msra.mxu0 0
    %213 = vmatprep.mubr.bf16.mxu0 0
    %214 = vmatmul.mubr.bf16.gmra.mxu0 %v92
    %v215 = vpop.f32.mrf.mxu0
    %v216 = vadd.f32 %v173, %v215
    %v217 = vpop.f32.mrf.mxu0
    %v218 = vpop.f32.mrf.mxu0
    %v219 = vadd.f32 %v173, %v218
    %v220 = vpop.f32.mrf.mxu0
    %221 = vmatprep.mubr.bf16.mxu0 0
    %222 = vmatmul.mubr.bf16.gmra.mxu0 %v95
    %v223 = vpop.f32.mrf.mxu0
    %v224 = vadd.f32 %v173, %v223
    %v225 = vpop.f32.mrf.mxu0
    %v226 = vpop.f32.mrf.mxu0
    %v227 = vadd.f32 %v173, %v226
    %v228 = vpop.f32.mrf.mxu0
    %229 = vmatprep.mubr.bf16.mxu0 0
    %230 = vmatmul.mubr.bf16.gmra.mxu0 %v98
    %v231 = vpop.f32.mrf.mxu0
    %v232 = vadd.f32 %v173, %v231
    %v233 = vpop.f32.mrf.mxu0
    %v234 = vpop.f32.mrf.mxu0
    %v235 = vadd.f32 %v173, %v234
    %v236 = vpop.f32.mrf.mxu0
    %237 = vmatprep.mubr.bf16.mxu0 0
    %238 = vmatmul.mubr.bf16.gmra.mxu0 %v101
    %v239 = vpop.f32.mrf.mxu0
    %v240 = vadd.f32 %v173, %v239
    %v241 = vpop.f32.mrf.mxu0
    %v242 = vpop.f32.mrf.mxu0
    %v243 = vadd.f32 %v173, %v242
    %v244 = vpop.f32.mrf.mxu0
    %245 = vmatprep.mubr.bf16.mxu0 0
    %246 = vmatmul.mubr.bf16.gmra.mxu0 %v104
    %v247 = vpop.f32.mrf.mxu0
    %v248 = vadd.f32 %v173, %v247
    %v249 = vpop.f32.mrf.mxu0
    %v250 = vpop.f32.mrf.mxu0
    %v251 = vadd.f32 %v173, %v250
    %v252 = vpop.f32.mrf.mxu0
    %253 = vmatprep.mubr.bf16.mxu0 0
    %254 = vmatmul.mubr.bf16.gmra.mxu0 %v107
    %v255 = vpop.f32.mrf.mxu0
    %v256 = vadd.f32 %v173, %v255
    %v257 = vpop.f32.mrf.mxu0
    %v258 = vpop.f32.mrf.mxu0
    %v259 = vadd.f32 %v173, %v258
    %v260 = vpop.f32.mrf.mxu0
    %261 = vmatprep.mubr.bf16.mxu0 0
    %262 = vmatmul.mubr.bf16.gmra.mxu0 %v110
    %v263 = vpop.f32.mrf.mxu0
    %v264 = vadd.f32 %v173, %v263
    %v265 = vpop.f32.mrf.mxu0
    %v266 = vpop.f32.mrf.mxu0
    %v267 = vadd.f32 %v173, %v266
    %v268 = vpop.f32.mrf.mxu0
    %269 = vmatprep.mubr.bf16.mxu0 0
    %270 = vmatmul.mubr.bf16.gmra.mxu0 %v113
    %v271 = vpop.f32.mrf.mxu0
    %v272 = vadd.f32 %v173, %v271
    %v273 = vpop.f32.mrf.mxu0
    %v274 = vpop.f32.mrf.mxu0
    %v275 = vadd.f32 %v173, %v274
    %v276 = vpop.f32.mrf.mxu0
    %277 = vdwg.mxu0
    %vm278 = vcmask 261120
    %279 = vst.msk [vmem:[%s6] sm:$0xff] %vm278, %v216
    %280 = vst.msk [vmem:[%s6 + $0x8] sm:$0xff] %vm278, %v219
    %281 = vst.msk [vmem:[%s6 + $0x10] sm:$0xff] %vm278, %v224
    %282 = vst.msk [vmem:[%s6 + $0x18] sm:$0xff] %vm278, %v227
    %283 = vst.msk [vmem:[%s6 + $0x20] sm:$0xff] %vm278, %v232
    %284 = vst.msk [vmem:[%s6 + $0x28] sm:$0xff] %vm278, %v235
    %285 = vst.msk [vmem:[%s6 + $0x30] sm:$0xff] %vm278, %v240
    %286 = vst.msk [vmem:[%s6 + $0x38] sm:$0xff] %vm278, %v243
    %287 = vst.msk [vmem:[%s6 + $0x40] sm:$0xff] %vm278, %v248
    %288 = vst.msk [vmem:[%s6 + $0x48] sm:$0xff] %vm278, %v251
    %289 = vst.msk [vmem:[%s6 + $0x50] sm:$0xff] %vm278, %v256
    %290 = vst.msk [vmem:[%s6 + $0x58] sm:$0xff] %vm278, %v259
    %291 = vst.msk [vmem:[%s6 + $0x60] sm:$0xff] %vm278, %v264
    %292 = vst.msk [vmem:[%s6 + $0x68] sm:$0xff] %vm278, %v267
    %293 = vst.msk [vmem:[%s6 + $0x70] sm:$0xff] %vm278, %v272
    %294 = vst.msk [vmem:[%s6 + $0x78] sm:$0xff] %vm278, %v275
    // Predicated region
    $region22: #{tpu_custom_call.1} parent=1 // pred_check
      _
    $region23: #{tpu_custom_call.1} parent=1 // pred_check_branch
      %296 = sbr.rel (0) target = $region25
    $region24: #{tpu_custom_call.1} parent=1 // pred_region
      %s298 = ssub.s32 512, 512
      %299 = vsyncadd [#allocation3], %s298
      %s300 = sshll.u32 [#allocation2], 4
      %s301 = int_to_ptr.vmem [resolvable:$true] %s300
      %306 = dma.vmem_to_hbm [thread:$0]  %s301, 512, %s5, [#allocation3], 128, 128, 8
    $region25: #{tpu_custom_call.1} parent=1 // pred_fallthru
      _
    // Predicated region
    $region26: #{tpu_custom_call.1} parent=1 // pred_check
      _
    $region27: #{tpu_custom_call.1} parent=1 // pred_check_branch
      %308 = sbr.rel (0) target = $region29
    $region28: #{tpu_custom_call.1} parent=1 // pred_region
      _
    $region29: #{tpu_custom_call.1} parent=1 // pred_fallthru
      _
    // Predicated region
    $region30: #{tpu_custom_call.1} parent=1 // pred_check
      _
    $region31: #{tpu_custom_call.1} parent=1 // pred_check_branch
      %310 = sbr.rel (0) target = $region33
    $region32: #{tpu_custom_call.1} parent=1 // pred_region
      %311 = dma.done [#allocation3], 512
    $region33: #{tpu_custom_call.1} parent=1 // pred_fallthru
      _
    // Predicated region
    $region34: #{tpu_custom_call.1} parent=1 // pred_check
      _
    $region35: #{tpu_custom_call.1} parent=1 // pred_check_branch
      %313 = sbr.rel (0) target = $region37
    $region36: #{tpu_custom_call.1} parent=1 // pred_region
      _
    $region37: #{tpu_custom_call.1} parent=1 // pred_fallthru
      _
    %314 = vsyncpa [#allocation3], 1

</llo_original>
